<compile_context>
chip_gen: v6e
topology: v6e:2x2x1
jax: 0.10.0
libtpu: 0.0.40
codegen_flags: <defaults>
</compile_context>

<pallas_src>
import jax
import jax.numpy as jnp
import numpy as np
from jax.experimental import pallas as pl
from jax.experimental.pallas import tpu as pltpu

PAD_ID = 0
EOS_ID = 2


def _code_vec_kernel(tok_ref, pos_ref, emb_ref, posemb_ref, w_ref, out_ref):
    """One batch-tile of <eos>-token code vectors.

    tok_ref    : VMEM (TB, 1) int32 — <eos> token id per row
    pos_ref    : VMEM (TB, 1) int32 — <eos> position per row
    emb_ref    : VMEM (V, H)  bf16  — token embedding table (resident)
    posemb_ref : VMEM (S, H)  bf16  — position embedding table (resident)
    w_ref      : VMEM (H, H)  bf16  — dense stand-in for the encoder (resident)
    out_ref    : VMEM (TB, H) bf16  — L2-normalized code vectors
    """
    tb = out_ref.shape[0]
    V = emb_ref.shape[0]
    S = posemb_ref.shape[0]

    # Batched gather-as-matmul: build (TB, V) / (TB, S) one-hot selectors from
    # the index columns and hit the MXU.  This keeps the row gathers fully
    # vectorized (no serialized per-row dynamic slices, no per-row DMAs).
    tok = tok_ref[...]                                                  # (TB, 1) i32
    pos = pos_ref[...]                                                  # (TB, 1) i32
    tok_oh = jnp.where(tok == jax.lax.broadcasted_iota(jnp.int32, (tb, V), 1),
                       1.0, 0.0).astype(jnp.bfloat16)                   # (TB, V)
    pos_oh = jnp.where(pos == jax.lax.broadcasted_iota(jnp.int32, (tb, S), 1),
                       1.0, 0.0).astype(jnp.bfloat16)                   # (TB, S)

    # x = tok_emb[tok] + pos_emb[pos]   (exact: one-hot picks a single bf16 row)
    x = (jnp.dot(tok_oh, emb_ref[...], preferred_element_type=jnp.float32)
         + jnp.dot(pos_oh, posemb_ref[...], preferred_element_type=jnp.float32))

    # encoder stand-in: bf16 x bf16 -> f32 accumulation on the MXU, tanh on EUP
    h = jnp.tanh(jnp.dot(x.astype(jnp.bfloat16), w_ref[...],
                         preferred_element_type=jnp.float32))           # (TB, H)

    # torch.nn.functional.normalize(h, p=2, dim=1): x / max(||x||_2, 1e-12)
    #   == x * rsqrt(max(sum(x*x), 1e-24))    (rsqrt goes to the EUP slot)
    sumsq = jnp.sum(h * h, axis=-1, keepdims=True)                      # (TB, 1)
    out_ref[...] = (h * jax.lax.rsqrt(jnp.maximum(sumsq, 1e-24))).astype(out_ref.dtype)


def _round_up(x, m):
    return ((x + m - 1) // m) * m


def _choose_batch_tile(batch, cap=1024):
    """Adaptive batch tile.

    >=16 rows so bf16 (16,128) vregs are fully packed; big tiles amortize the
    ~0.35us per-grid-step pipeline overhead; when B >= 32 split into at least
    two tiles so both v7x TensorCores get grid steps; the cap keeps
    double-buffered tiles far under v7x's 64 MiB physical VMEM.
    """
    tb = max(16, _round_up(batch, 16))
    if tb > cap:
        return cap
    if batch >= 32:
        tb = max(16, _round_up((batch + 1) // 2, 16))
    return tb


def model_forward(source_ids, emb_table, pos_table, w_dense, *, batch_tile_cap=1024):
    """Equivalent of Model.forward(source_inputs=source_ids)."""
    B, S = source_ids.shape
    V, H = emb_table.shape

    # --- glue (tiny integer work on [B,S]/[B]): <eos> bookkeeping ------------
    idx = jnp.arange(S, dtype=jnp.int32)
    eos_mask = source_ids == EOS_ID
    last_pos = jnp.max(jnp.where(eos_mask, idx[None, :], -1), axis=1)
    # clamp to a valid position (examples are validated host-side to contain an
    # <eos>; clamping keeps the kernel path well-defined either way)
    last_pos = jnp.clip(last_pos, 0, S - 1).astype(jnp.int32)
    eos_tok = jnp.take_along_axis(source_ids, last_pos[:, None], axis=1).astype(jnp.int32)
    eos_pos = last_pos[:, None]                                         # (B, 1)

    # --- tiling ---------------------------------------------------------------
    TB = _choose_batch_tile(B, batch_tile_cap)
    B_pad = _round_up(B, TB)
    if B_pad != B:
        # padded rows index row 0 of the tables; their (finite) outputs are
        # sliced off before returning, so this is safe.
        eos_tok = jnp.pad(eos_tok, ((0, B_pad - B), (0, 0)))
        eos_pos = jnp.pad(eos_pos, ((0, B_pad - B), (0, 0)))

    emb_bf = emb_table.astype(jnp.bfloat16)
    pos_bf = pos_table.astype(jnp.bfloat16)
    w_bf = w_dense.astype(jnp.bfloat16)

    grid = (B_pad // TB,)
    grid_spec = pltpu.PrefetchScalarGridSpec(
        num_scalar_prefetch=0,
        grid=grid,
        in_specs=[
            pl.BlockSpec((TB, 1), lambda i: (i, 0)),   # <eos> token ids
            pl.BlockSpec((TB, 1), lambda i: (i, 0)),   # <eos> positions
            pl.BlockSpec((V, H), lambda i: (0, 0)),    # token embeddings (resident)
            pl.BlockSpec((S, H), lambda i: (0, 0)),    # position embeddings (resident)
            pl.BlockSpec((H, H), lambda i: (0, 0)),    # dense weight (resident)
        ],
        out_specs=pl.BlockSpec((TB, H), lambda i: (i, 0)),
    )

    cost = pl.CostEstimate(
        flops=2 * B_pad * H * (H + V + S),
        transcendentals=B_pad * (H + 1),
        bytes_accessed=(2 * B_pad * 4               # two i32 index columns
                        + (V + S) * H * 2           # bf16 tables
                        + H * H * 2                 # bf16 weight
                        + B_pad * H * 2),           # bf16 output
    )

    out = pl.pallas_call(
        _code_vec_kernel,
        out_shape=jax.ShapeDtypeStruct((B_pad, H), jnp.bfloat16),
        grid_spec=grid_spec,
        compiler_params=pltpu.CompilerParams(
            # batch tiles are independent -> shard across TensorCores (v7x)
            dimension_semantics=("parallel",)
        ),
        cost_estimate=cost,
    )(eos_tok, eos_pos, emb_bf, pos_bf, w_bf)
    return out[:B]


def model_forward_ref(source_ids, emb_table, pos_table, w_dense):
    """Pure-JAX reference mirroring the original module semantics
    (full-sequence masked encode -> gather the last <eos> row -> L2 normalize),
    using the same bf16-input / f32-accumulate numerics as the kernel."""
    B, S = source_ids.shape
    emb = emb_table.astype(jnp.bfloat16).astype(jnp.float32)
    pos = pos_table.astype(jnp.bfloat16).astype(jnp.float32)
    x = jnp.take(emb, source_ids, axis=0) + pos[None, :, :]
    x = jnp.where((source_ids != PAD_ID)[..., None], x, 0.0)
    h = jnp.tanh(jnp.einsum("bsh,hk->bsk", x.astype(jnp.bfloat16),
                            w_dense.astype(jnp.bfloat16),
                            preferred_element_type=jnp.float32))
    idx = jnp.arange(S, dtype=jnp.int32)
    last_pos = jnp.max(jnp.where(source_ids == EOS_ID, idx[None, :], -1), axis=1)
    last_pos = jnp.clip(last_pos, 0, S - 1)
    vec = h[jnp.arange(B), last_pos, :]
    nrm = jnp.sqrt(jnp.sum(vec * vec, axis=1, keepdims=True))
    return vec / jnp.maximum(nrm, 1e-12)


if __name__ == "__main__":
    B, S, H, V = 8, 8, 128, 32

    # deterministic synthetic parameters (stand-in for the T5 encoder weights)
    key = jax.random.PRNGKey(0)
    k_emb, k_pos, k_w = jax.random.split(key, 3)
    emb_table = jax.random.normal(k_emb, (V, H), jnp.float32) * 0.1
    pos_table = jax.random.normal(k_pos, (S, H), jnp.float32) * 0.1
    w_dense = jax.random.normal(k_w, (H, H), jnp.float32) * 0.1

    # token ids: 0 = pad, 2 = <eos>, exactly one <eos> per example
    source_ids = jnp.array(
        [
            [5, 7, 9, 4, 2, 0, 0, 0],
            [3, 6, 8, 10, 11, 2, 0, 0],
            [12, 4, 2, 0, 0, 0, 0, 0],
            [9, 9, 13, 7, 6, 5, 4, 2],
            [21, 2, 0, 0, 0, 0, 0, 0],
            [17, 18, 19, 20, 2, 0, 0, 0],
            [6, 3, 3, 6, 7, 8, 2, 0],
            [30, 29, 28, 2, 0, 0, 0, 0],
        ],
        dtype=jnp.int32,
    )

    # host-side equivalent of the "same number of <eos> tokens" ValueError check
    eos_counts = np.asarray((source_ids == EOS_ID).sum(axis=1))
    if len(np.unique(eos_counts)) > 1:
        raise ValueError("All examples must have the same number of <eos> tokens.")
    if eos_counts[0] == 0:
        raise ValueError("Examples must contain an <eos> token.")

    out = jax.block_until_ready(model_forward(source_ids, emb_table, pos_table, w_dense))
    ref = jax.block_until_ready(model_forward_ref(source_ids, emb_table, pos_table, w_dense))

    np.testing.assert_allclose(np.asarray(out, dtype=np.float32), np.asarray(ref),
                               rtol=2e-2, atol=2e-2)
    print("KERNEL_OK")
</pallas_src>

<mosaic_0001>
module attributes {stable_mosaic.version = 11 : i64} {
  func.func @_code_vec_kernel(%arg0: i32, %arg1: memref<16x1xi32, #tpu.memory_space<vmem>>, %arg2: memref<16x1xi32, #tpu.memory_space<vmem>>, %arg3: memref<32x128xbf16, #tpu.memory_space<vmem>>, %arg4: memref<8x128xbf16, #tpu.memory_space<vmem>>, %arg5: memref<128x128xbf16, #tpu.memory_space<vmem>>, %arg6: memref<16x128xbf16, #tpu.memory_space<vmem>>) attributes {dimension_semantics = [#tpu.dimension_semantics<parallel>], iteration_bounds = array<i64: 1>, scalar_prefetch = 0 : i64, scratch_operands = 0 : i64, tpu.core_type = #tpu.core_type<tc>, window_params = [{transform_indices = @transform_0, window_bounds = array<i64: 16, 1>}, {transform_indices = @transform_1, window_bounds = array<i64: 16, 1>}, {pipeline_mode = #tpu.pipeline_mode<synchronous>, transform_indices = @transform_2, window_bounds = array<i64: 32, 128>}, {pipeline_mode = #tpu.pipeline_mode<synchronous>, transform_indices = @transform_3, window_bounds = array<i64: 8, 128>}, {pipeline_mode = #tpu.pipeline_mode<synchronous>, transform_indices = @transform_4, window_bounds = array<i64: 128, 128>}, {transform_indices = @transform_5, window_bounds = array<i64: 16, 128>}]} {
    %c0 = arith.constant 0 : index
    %c0_0 = arith.constant 0 : index
    %0 = vector.load %arg1[%c0, %c0_0] : memref<16x1xi32, #tpu.memory_space<vmem>>, vector<16x1xi32>
    %c0_1 = arith.constant 0 : index
    %c0_2 = arith.constant 0 : index
    %1 = vector.load %arg2[%c0_1, %c0_2] : memref<16x1xi32, #tpu.memory_space<vmem>>, vector<16x1xi32>
    %2 = tpu.iota {dimensions = array<i32: 1>} : vector<16x32xi32>
    %3 = vector.broadcast %0 : vector<16x1xi32> to vector<16x32xi32>
    %4 = arith.cmpi eq, %3, %2 : vector<16x32xi32>
    %cst = arith.constant 1.000000e+00 : f32
    %cst_3 = arith.constant 0.000000e+00 : f32
    %5 = vector.broadcast %cst : f32 to vector<16x32xf32>
    %6 = vector.broadcast %cst_3 : f32 to vector<16x32xf32>
    %7 = arith.select %4, %5, %6 : vector<16x32xi1>, vector<16x32xf32>
    %8 = arith.truncf %7 : vector<16x32xf32> to vector<16x32xbf16>
    %9 = tpu.iota {dimensions = array<i32: 1>} : vector<16x8xi32>
    %10 = vector.broadcast %1 : vector<16x1xi32> to vector<16x8xi32>
    %11 = arith.cmpi eq, %10, %9 : vector<16x8xi32>
    %cst_4 = arith.constant 1.000000e+00 : f32
    %cst_5 = arith.constant 0.000000e+00 : f32
    %12 = vector.broadcast %cst_4 : f32 to vector<16x8xf32>
    %13 = vector.broadcast %cst_5 : f32 to vector<16x8xf32>
    %14 = arith.select %11, %12, %13 : vector<16x8xi1>, vector<16x8xf32>
    %15 = arith.truncf %14 : vector<16x8xf32> to vector<16x8xbf16>
    %c0_6 = arith.constant 0 : index
    %c0_7 = arith.constant 0 : index
    %16 = vector.load %arg3[%c0_6, %c0_7] : memref<32x128xbf16, #tpu.memory_space<vmem>>, vector<32x128xbf16>
    %cst_8 = arith.constant dense<0.000000e+00> : vector<16x128xf32>
    %17 = tpu.matmul %8, %16, %cst_8 {dimension_numbers = #tpu.dot_dimension_numbers<[1], [0], [0], [1], [0, 0, 1, 1], [], []>} : vector<16x32xbf16>, vector<32x128xbf16>, vector<16x128xf32> -> vector<16x128xf32>
    %c0_9 = arith.constant 0 : index
    %c0_10 = arith.constant 0 : index
    %18 = vector.load %arg4[%c0_9, %c0_10] : memref<8x128xbf16, #tpu.memory_space<vmem>>, vector<8x128xbf16>
    %cst_11 = arith.constant dense<0.000000e+00> : vector<16x128xf32>
    %19 = tpu.matmul %15, %18, %cst_11 {dimension_numbers = #tpu.dot_dimension_numbers<[1], [0], [0], [1], [0, 0, 1, 1], [], []>} : vector<16x8xbf16>, vector<8x128xbf16>, vector<16x128xf32> -> vector<16x128xf32>
    %20 = arith.addf %17, %19 : vector<16x128xf32>
    %21 = arith.truncf %20 : vector<16x128xf32> to vector<16x128xbf16>
    %c0_12 = arith.constant 0 : index
    %c0_13 = arith.constant 0 : index
    %22 = vector.load %arg5[%c0_12, %c0_13] : memref<128x128xbf16, #tpu.memory_space<vmem>>, vector<128x128xbf16>
    %cst_14 = arith.constant dense<0.000000e+00> : vector<16x128xf32>
    %23 = tpu.matmul %21, %22, %cst_14 {dimension_numbers = #tpu.dot_dimension_numbers<[1], [0], [0], [1], [0, 0, 1, 1], [], []>} : vector<16x128xbf16>, vector<128x128xbf16>, vector<16x128xf32> -> vector<16x128xf32>
    %24 = math.tanh %23 : vector<16x128xf32>
    %25 = arith.mulf %24, %24 : vector<16x128xf32>
    %cst_15 = arith.constant dense<0.000000e+00> : vector<16xf32>
    %26 = vector.multi_reduction <add>, %25, %cst_15 [1] : vector<16x128xf32> to vector<16xf32>
    %27 = vector.shape_cast %26 : vector<16xf32> to vector<16x1xf32>
    %cst_16 = arith.constant 1.000000e-24 : f32
    %28 = vector.broadcast %cst_16 : f32 to vector<16x1xf32>
    %29 = arith.maximumf %27, %28 : vector<16x1xf32>
    %30 = math.rsqrt %29 : vector<16x1xf32>
    %31 = vector.broadcast %30 : vector<16x1xf32> to vector<16x128xf32>
    %32 = arith.mulf %24, %31 : vector<16x128xf32>
    %33 = arith.truncf %32 : vector<16x128xf32> to vector<16x128xbf16>
    %c0_17 = arith.constant 0 : index
    %c0_18 = arith.constant 0 : index
    %34 = vector.load %arg6[%c0_17, %c0_18] : memref<16x128xbf16, #tpu.memory_space<vmem>>, vector<16x128xbf16>
    tpu.vector_store %arg6[%c0_17, %c0_18], %33 {strides = array<i32>} : memref<16x128xbf16, #tpu.memory_space<vmem>>, vector<16x128xbf16>,
    return
  }
  func.func @transform_0(%arg0: i32) -> (i32, i32) {
    %c0_i32 = arith.constant 0 : i32
    %c0_i32_0 = arith.constant 0 : i32
    return %arg0, %c0_i32 : i32, i32
  }
  func.func @transform_1(%arg0: i32) -> (i32, i32) {
    %c0_i32 = arith.constant 0 : i32
    %c0_i32_0 = arith.constant 0 : i32
    return %arg0, %c0_i32 : i32, i32
  }
  func.func @transform_2(%arg0: i32) -> (i32, i32) {
    %c0_i32 = arith.constant 0 : i32
    %c0_i32_0 = arith.constant 0 : i32
    %c0_i32_1 = arith.constant 0 : i32
    return %c0_i32, %c0_i32_0 : i32, i32
  }
  func.func @transform_3(%arg0: i32) -> (i32, i32) {
    %c0_i32 = arith.constant 0 : i32
    %c0_i32_0 = arith.constant 0 : i32
    %c0_i32_1 = arith.constant 0 : i32
    return %c0_i32, %c0_i32_0 : i32, i32
  }
  func.func @transform_4(%arg0: i32) -> (i32, i32) {
    %c0_i32 = arith.constant 0 : i32
    %c0_i32_0 = arith.constant 0 : i32
    %c0_i32_1 = arith.constant 0 : i32
    return %c0_i32, %c0_i32_0 : i32, i32
  }
  func.func @transform_5(%arg0: i32) -> (i32, i32) {
    %c0_i32 = arith.constant 0 : i32
    %c0_i32_0 = arith.constant 0 : i32
    return %arg0, %c0_i32 : i32, i32
  }
}

</mosaic_0001>

<llo_original>
// kernel: tpu_custom_call.1
$region0: #{tpu_custom_call.1}
  #allocation0 [shape = 'u32[]', space=smem, size = 0x4, offset = 0x4, fixed_abs, tag = 'smem constant byte address 0x4 - core index']
  #allocation1 [shape = 'u32[144,128]{1,0:T(1,128)}', space=vmem, size = 0x12000, scoped, tag = 'internal scratch']
  %s0 = inlined_call_operand.vmem [shape: s32[16,1], index: 0, kind: input, shape index: {}]
  %s1 = inlined_call_operand.vmem [shape: s32[16,1], index: 1, kind: input, shape index: {}]
  %s2 = inlined_call_operand.vmem [shape: bf16[32,128], index: 2, kind: input, shape index: {}]
  %s3 = inlined_call_operand.vmem [shape: bf16[8,128], index: 3, kind: input, shape index: {}]
  %s4 = inlined_call_operand.hbm [shape: bf16[128,128], index: 4, kind: input, shape index: {}]
  %s5 = inlined_call_operand.hbm [shape: bf16[16,128], index: 5, kind: output, shape index: {}]
  %s6 = sld [smem:[#allocation0]]
  $region34: #{tpu_custom_call.1} parent=0
    _
  %s8 = ssub.s32 1, %s6
  %s9 = scalar_select 0, %s8, %s6
  $region1: #{tpu_custom_call.1} parent=0
    #allocation2 [shape = 'u8[32768]{0}', space=vmem, size = 0x8000, scoped, tag = 'input window, operand 4, single buffered']
    #allocation3 [shape = 's32[1]{0}', space=sflag, size = 0x4, scoped, tag = 'scoped memory for tpu_custom_call.1']
    #allocation4 [shape = 's32[1]{0}', space=sflag, size = 0x4, scoped, tag = 'scoped memory for tpu_custom_call.1']
    #allocation5 [shape = 'u8[4096]{0}', space=vmem, size = 0x1000, scoped, tag = 'output window, operand 0, single buffered']
    %10 = vsyncpa [#allocation3], 0
    %11 = vsyncpa [#allocation4], 0
    // Predicated region
    $region2: #{tpu_custom_call.1} parent=1 // pred_check
      _
    $region3: #{tpu_custom_call.1} parent=1 // pred_check_branch
      %13 = sbr.rel (0) target = $region5
    $region4: #{tpu_custom_call.1} parent=1 // pred_region
      _
    $region5: #{tpu_custom_call.1} parent=1 // pred_fallthru
      _
    // Predicated region
    $region6: #{tpu_custom_call.1} parent=1 // pred_check
      _
    $region7: #{tpu_custom_call.1} parent=1 // pred_check_branch
      %15 = sbr.rel (0) target = $region9
    $region8: #{tpu_custom_call.1} parent=1 // pred_region
      _
    $region9: #{tpu_custom_call.1} parent=1 // pred_fallthru
      _
    // Predicated region
    $region10: #{tpu_custom_call.1} parent=1 // pred_check
      _
    $region11: #{tpu_custom_call.1} parent=1 // pred_check_branch
      %17 = sbr.rel (0) target = $region13
    $region12: #{tpu_custom_call.1} parent=1 // pred_region
      _
    $region13: #{tpu_custom_call.1} parent=1 // pred_fallthru
      _
    // Predicated region
    $region14: #{tpu_custom_call.1} parent=1 // pred_check
      _
    $region15: #{tpu_custom_call.1} parent=1 // pred_check_branch
      %19 = sbr.rel (0) target = $region17
    $region16: #{tpu_custom_call.1} parent=1 // pred_region
      _
    $region17: #{tpu_custom_call.1} parent=1 // pred_fallthru
      _
    // Predicated region
    $region18: #{tpu_custom_call.1} parent=1 // pred_check
      _
    $region19: #{tpu_custom_call.1} parent=1 // pred_check_branch
      %21 = sbr.rel (0) target = $region21
    $region20: #{tpu_custom_call.1} parent=1 // pred_region
      %s23 = ssub.s32 1024, 1024
      %24 = vsyncadd [#allocation3], %s23
      %s25 = sshll.u32 [#allocation2], 4
      %s26 = int_to_ptr.vmem [resolvable:$true] %s25
      %31 = dma.hbm_to_vmem [thread:$0]  %s4, 1024, %s26, [#allocation3], 64, 64, 4
    $region21: #{tpu_custom_call.1} parent=1 // pred_fallthru
      _
    // Predicated region
    $region22: #{tpu_custom_call.1} parent=1 // pred_check
      _
    $region23: #{tpu_custom_call.1} parent=1 // pred_check_branch
      %33 = sbr.rel (0) target = $region25
    $region24: #{tpu_custom_call.1} parent=1 // pred_region
      %34 = dma.done [#allocation3], 1024
    $region25: #{tpu_custom_call.1} parent=1 // pred_fallthru
      _
    %v36 = vld [vmem:[%s0] sm:$0xff]
    %v37 = vld [vmem:[%s0 + $0x8] sm:$0xff]
    %v38 = vld [vmem:[%s1] sm:$0xff]
    %v39 = vld [vmem:[%s1 + $0x8] sm:$0xff]
    %v40 = vlaneseq
    %v41 = vand.u32 %v40, 127
    %42 = vset.pattern.permute.xlu0 0
    %43 = vperm.xlu0 %42, %v36
    %v44 = vpop.permute.xlu0 %43
    %45 = vset.pattern.permute.xlu0 0
    %46 = vperm.xlu0 %45, %v37
    %v47 = vpop.permute.xlu0 %46
    %vm48 = vcmp.eq.s32.totalorder %v44, %v41
    %vm49 = vcmp.eq.s32.totalorder %v47, %v41
    %v50 = vsel %vm48, 1.0, 0.0
    %v51 = vsel %vm49, 1.0, 0.0
    %v52 = vpack.c.bf16 %v51, %v50
    %53 = vset.pattern.permute.xlu0 0
    %54 = vperm.xlu0 %53, %v38
    %v55 = vpop.permute.xlu0 %54
    %56 = vset.pattern.permute.xlu0 0
    %57 = vperm.xlu0 %56, %v39
    %v58 = vpop.permute.xlu0 %57
    %vm59 = vcmp.eq.s32.totalorder %v55, %v41
    %vm60 = vcmp.eq.s32.totalorder %v58, %v41
    %v61 = vsel %vm59, 1.0, 0.0
    %v62 = vsel %vm60, 1.0, 0.0
    %v63 = vpack.c.bf16 %v62, %v61
    %v64 = vld [vmem:[%s2] sm:$0xf]
    %v65 = vld [vmem:[%s2 + $0x4] sm:$0xf]
    %v66 = vld [vmem:[%s2 + $0x8] sm:$0xf]
    %v67 = vld [vmem:[%s2 + $0xc] sm:$0xf]
    %v68 = vld [vmem:[%s3] sm:$0xf]
    %vm69 = vcmask 64512
    %v71 = vsel %vm69, %v63, 0
    %vm73 = vcmask 1043456
    %v75 = vsel %vm73, %v68, 0
    %77 = vmatprep.subr.bf16.mxu0 0
    %78 = vmatpush1.bf16.msra.mxu0 0
    %79 = vmatprep.subr.bf16.mxu0 0
    %80 = vmatpush1.bf16.msra.mxu0 0
    %81 = vmatprep.subr.bf16.mxu0 0
    %82 = vmatpush1.bf16.msra.mxu0 0
    %83 = vmatprep.subr.bf16.mxu0 0
    %84 = vmatpush1.bf16.msra.mxu0 0
    %85 = vmatprep.subr.bf16.mxu0 0
    %86 = vmatpush1.bf16.msra.mxu0 0
    %87 = vmatprep.subr.bf16.mxu0 0
    %88 = vmatpush1.bf16.msra.mxu0 0
    %89 = vmatprep.subr.bf16.mxu0 0
    %90 = vmatpush1.bf16.msra.mxu0 0
    %91 = vmatprep.subr.bf16.mxu0 0
    %92 = vmatpush1.bf16.msra.mxu0 %v75
    %93 = vmatprep.subr.bf16.mxu0 0
    %94 = vmatpush2.bf16.msra.mxu0 0
    %95 = vmatprep.subr.bf16.mxu0 0
    %96 = vmatpush2.bf16.msra.mxu0 0
    %97 = vmatprep.subr.bf16.mxu0 0
    %98 = vmatpush2.bf16.msra.mxu0 0
    %99 = vmatprep.subr.bf16.mxu0 0
    %100 = vmatpush2.bf16.msra.mxu0 0
    %101 = vmatprep.subr.bf16.mxu0 0
    %102 = vmatpush2.bf16.msra.mxu0 0
    %103 = vmatprep.subr.bf16.mxu0 0
    %104 = vmatpush2.bf16.msra.mxu0 0
    %105 = vmatprep.subr.bf16.mxu0 0
    %106 = vmatpush2.bf16.msra.mxu0 0
    %107 = vmatprep.subr.bf16.mxu0 0
    %108 = vmatpush2.bf16.msra.mxu0 0
    %109 = vmatprep.mubr.bf16.mxu0 0
    %110 = vmatmul.mubr.bf16.gmra.mxu0 %v71
    %v111 = vpop.f32.mrf.mxu0
    %v112 = vadd.f32 0.0, %v111
    %v113 = vpop.f32.mrf.mxu0
    %v114 = vpop.f32.mrf.mxu0
    %v115 = vadd.f32 0.0, %v114
    %v116 = vpop.f32.mrf.mxu0
    %117 = vdwg.mxu0
    %v122 = vunpack.c.l.b16 %v64
    %v123 = vunpack.c.l.b16 %v65
    %v124 = vunpack.c.l.b16 %v66
    %v125 = vunpack.c.l.b16 %v67
    %v126 = vpack.c.b16 %v123, %v122
    %v127 = vpack.c.b16 %v125, %v124
    %vm130 = vcmask 261120
    %v132 = vsel %vm130, %v52, 0
    %134 = vmatprep.subr.bf16.mxu0 0
    %135 = vmatpush1.bf16.msra.mxu0 0
    %136 = vmatprep.subr.bf16.mxu0 0
    %137 = vmatpush1.bf16.msra.mxu0 0
    %138 = vmatprep.subr.bf16.mxu0 0
    %139 = vmatpush1.bf16.msra.mxu0 0
    %140 = vmatprep.subr.bf16.mxu0 0
    %141 = vmatpush1.bf16.msra.mxu0 0
    %142 = vmatprep.subr.bf16.mxu0 0
    %143 = vmatpush1.bf16.msra.mxu0 0
    %144 = vmatprep.subr.bf16.mxu0 0
    %145 = vmatpush1.bf16.msra.mxu0 0
    %146 = vmatprep.subr.bf16.mxu0 0
    %147 = vmatpush1.bf16.msra.mxu0 %v127
    %148 = vmatprep.subr.bf16.mxu0 0
    %149 = vmatpush1.bf16.msra.mxu0 %v126
    %150 = vmatprep.subr.bf16.mxu0 0
    %151 = vmatpush2.bf16.msra.mxu0 0
    %152 = vmatprep.subr.bf16.mxu0 0
    %153 = vmatpush2.bf16.msra.mxu0 0
    %154 = vmatprep.subr.bf16.mxu0 0
    %155 = vmatpush2.bf16.msra.mxu0 0
    %156 = vmatprep.subr.bf16.mxu0 0
    %157 = vmatpush2.bf16.msra.mxu0 0
    %158 = vmatprep.subr.bf16.mxu0 0
    %159 = vmatpush2.bf16.msra.mxu0 0
    %160 = vmatprep.subr.bf16.mxu0 0
    %161 = vmatpush2.bf16.msra.mxu0 0
    %162 = vmatprep.subr.bf16.mxu0 0
    %163 = vmatpush2.bf16.msra.mxu0 0
    %164 = vmatprep.subr.bf16.mxu0 0
    %165 = vmatpush2.bf16.msra.mxu0 0
    %166 = vmatprep.mubr.bf16.mxu0 0
    %167 = vmatmul.mubr.bf16.gmra.mxu0 %v132
    %v168 = vpop.f32.mrf.mxu0
    %v169 = vadd.f32 %v112, %v168
    %v170 = vpop.f32.mrf.mxu0
    %v171 = vpop.f32.mrf.mxu0
    %v172 = vadd.f32 %v115, %v171
    %v173 = vpop.f32.mrf.mxu0
    %174 = vdwg.mxu0
    %v175 = vpack.c.bf16 %v172, %v169
    %v176 = vld [vmem:[#allocation2] sm:$0xf]
    %v177 = vld [vmem:[#allocation2 + $0x4] sm:$0xf]
    %v178 = vld [vmem:[#allocation2 + $0x8] sm:$0xf]
    %v179 = vld [vmem:[#allocation2 + $0xc] sm:$0xf]
    %v180 = vld [vmem:[#allocation2 + $0x10] sm:$0xf]
    %v181 = vld [vmem:[#allocation2 + $0x14] sm:$0xf]
    %v182 = vld [vmem:[#allocation2 + $0x18] sm:$0xf]
    %v183 = vld [vmem:[#allocation2 + $0x1c] sm:$0xf]
    %v184 = vld [vmem:[#allocation2 + $0x20] sm:$0xf]
    %v185 = vld [vmem:[#allocation2 + $0x24] sm:$0xf]
    %v186 = vld [vmem:[#allocation2 + $0x28] sm:$0xf]
    %v187 = vld [vmem:[#allocation2 + $0x2c] sm:$0xf]
    %v188 = vld [vmem:[#allocation2 + $0x30] sm:$0xf]
    %v189 = vld [vmem:[#allocation2 + $0x34] sm:$0xf]
    %v190 = vld [vmem:[#allocation2 + $0x38] sm:$0xf]
    %v191 = vld [vmem:[#allocation2 + $0x3c] sm:$0xf]
    %v208 = vunpack.c.l.b16 %v176
    %v209 = vunpack.c.l.b16 %v177
    %v210 = vunpack.c.l.b16 %v178
    %v211 = vunpack.c.l.b16 %v179
    %v212 = vunpack.c.l.b16 %v180
    %v213 = vunpack.c.l.b16 %v181
    %v214 = vunpack.c.l.b16 %v182
    %v215 = vunpack.c.l.b16 %v183
    %v216 = vunpack.c.l.b16 %v184
    %v217 = vunpack.c.l.b16 %v185
    %v218 = vunpack.c.l.b16 %v186
    %v219 = vunpack.c.l.b16 %v187
    %v220 = vunpack.c.l.b16 %v188
    %v221 = vunpack.c.l.b16 %v189
    %v222 = vunpack.c.l.b16 %v190
    %v223 = vunpack.c.l.b16 %v191
    %v224 = vpack.c.b16 %v209, %v208
    %v225 = vpack.c.b16 %v211, %v210
    %v226 = vpack.c.b16 %v213, %v212
    %v227 = vpack.c.b16 %v215, %v214
    %v228 = vpack.c.b16 %v217, %v216
    %v229 = vpack.c.b16 %v219, %v218
    %v230 = vpack.c.b16 %v221, %v220
    %v231 = vpack.c.b16 %v223, %v222
    %240 = vmatprep.subr.bf16.mxu0 0
    %241 = vmatpush1.bf16.msra.mxu0 %v231
    %242 = vmatprep.subr.bf16.mxu0 0
    %243 = vmatpush1.bf16.msra.mxu0 %v230
    %244 = vmatprep.subr.bf16.mxu0 0
    %245 = vmatpush1.bf16.msra.mxu0 %v229
    %246 = vmatprep.subr.bf16.mxu0 0
    %247 = vmatpush1.bf16.msra.mxu0 %v228
    %248 = vmatprep.subr.bf16.mxu0 0
    %249 = vmatpush1.bf16.msra.mxu0 %v227
    %250 = vmatprep.subr.bf16.mxu0 0
    %251 = vmatpush1.bf16.msra.mxu0 %v226
    %252 = vmatprep.subr.bf16.mxu0 0
    %253 = vmatpush1.bf16.msra.mxu0 %v225
    %254 = vmatprep.subr.bf16.mxu0 0
    %255 = vmatpush1.bf16.msra.mxu0 %v224
    %256 = vmatprep.subr.bf16.mxu0 0
    %257 = vmatpush2.bf16.msra.mxu0 0
    %258 = vmatprep.subr.bf16.mxu0 0
    %259 = vmatpush2.bf16.msra.mxu0 0
    %260 = vmatprep.subr.bf16.mxu0 0
    %261 = vmatpush2.bf16.msra.mxu0 0
    %262 = vmatprep.subr.bf16.mxu0 0
    %263 = vmatpush2.bf16.msra.mxu0 0
    %264 = vmatprep.subr.bf16.mxu0 0
    %265 = vmatpush2.bf16.msra.mxu0 0
    %266 = vmatprep.subr.bf16.mxu0 0
    %267 = vmatpush2.bf16.msra.mxu0 0
    %268 = vmatprep.subr.bf16.mxu0 0
    %269 = vmatpush2.bf16.msra.mxu0 0
    %270 = vmatprep.subr.bf16.mxu0 0
    %271 = vmatpush2.bf16.msra.mxu0 0
    %272 = vmatprep.mubr.bf16.mxu0 0
    %273 = vmatmul.mubr.bf16.gmra.mxu0 %v175
    %v274 = vpop.f32.mrf.mxu0
    %v275 = vadd.f32 0.0, %v274
    %v276 = vpop.f32.mrf.mxu0
    %v277 = vpop.f32.mrf.mxu0
    %v278 = vadd.f32 0.0, %v277
    %v279 = vpop.f32.mrf.mxu0
    %280 = vdwg.mxu0
    %v281 = vtanh.pop %v275
    %v282 = vtanh.pop %v278
    %v283 = vmul.f32 %v281, %v281
    %v284 = vmul.f32 %v282, %v282
    %285 = vadd.xlane.f32.xlu0 %v283
    %v286 = vpop.xlane.xlu0 %285
    %287 = vadd.xlane.f32.xlu0 %v284
    %v288 = vpop.xlane.xlu0 %287
    %v289 = vmax.f32 %v286, 1e-24
    %v290 = vmax.f32 %v288, 1e-24
    %v291 = vrsqrt.pop %v289
    %v292 = vrsqrt.pop %v290
    %v293 = vmul.f32 %v281, %v291
    %v294 = vmul.f32 %v282, %v292
    %v295 = vpack.c.bf16 %v294, %v293
    %v297 = vunpack.c.l.b16 %v295
    %v298 = vunpack.c.h.b16 %v295
    %v299 = vpack.c.b16 %v297, %v297
    %v300 = vpack.c.b16 %v298, %v298
    %303 = vst [vmem:[#allocation5] sm:$0xf] %v299
    %304 = vst [vmem:[#allocation5 + $0x4] sm:$0xf] %v300
    // Predicated region
    $region26: #{tpu_custom_call.1} parent=1 // pred_check
      _
    $region27: #{tpu_custom_call.1} parent=1 // pred_check_branch
      %306 = sbr.rel (0) target = $region29
    $region28: #{tpu_custom_call.1} parent=1 // pred_region
      %s308 = ssub.s32 128, 128
      %309 = vsyncadd [#allocation4], %s308
      %s310 = sshll.u32 [#allocation5], 4
      %s311 = int_to_ptr.vmem [resolvable:$true] %s310
      %316 = dma.vmem_to_hbm [thread:$0]  %s311, 128, %s5, [#allocation4], 64, 64, 4
    $region29: #{tpu_custom_call.1} parent=1 // pred_fallthru
      _
    // Predicated region
    $region30: #{tpu_custom_call.1} parent=1 // pred_check
      _
    $region31: #{tpu_custom_call.1} parent=1 // pred_check_branch
      %318 = sbr.rel (0) target = $region33
    $region32: #{tpu_custom_call.1} parent=1 // pred_region
      %319 = dma.done [#allocation4], 128
    $region33: #{tpu_custom_call.1} parent=1 // pred_fallthru
      _
    %320 = vsyncpa [#allocation3], 1
    %321 = vsyncpa [#allocation4], 1

</llo_original>
